<compile_context>
chip_gen: v7x
topology: tpu7x:2x2x1
jax: 0.10.0
libtpu: 0.0.40
codegen_flags: <defaults>
</compile_context>

<pallas_src>
import functools

import jax
import jax.numpy as jnp
from jax.experimental import pallas as pl
from jax.experimental.pallas import tpu as pltpu


def _round_up(x, m):
    return (x + m - 1) // m * m


def _vmem_budget():
    """(per-logits-tile byte budget, vmem_limit_bytes), generation aware.

    In-kernel f32 intermediates are a handful of (tb, N) arrays, so the total
    pipelined footprint is roughly 2x the tile (double buffer) plus ~6x the
    tile of internal scratch.  6 MiB tiles / 64 MiB limit is comfortable on
    v5e/v6e (128 MiB physical VMEM); v7x only has 64 MiB physical, so stay at
    4 MiB tiles / 48 MiB there (and whenever the query is unavailable).
    """
    try:
        phys = pltpu.get_tpu_info().vmem_capacity_bytes
    except Exception:
        phys = None
    if phys is not None and phys >= 96 * 1024 * 1024:
        return 6 * 1024 * 1024, 64 * 1024 * 1024
    return 4 * 1024 * 1024, 48 * 1024 * 1024


def _pick_block_batch(B, N, tile_budget_bytes):
    # Budget in f32 terms (the kernel's intermediates are f32 regardless of
    # the input dtype).  No artificial row cap -- for small N this is what
    # keeps the ~0.35us/grid-step overhead amortized.
    rows = tile_budget_bytes // max(1, N * 4)
    rows = max(8, rows // 8 * 8)
    rows = min(rows, _round_up(B, 8))
    return max(8, rows // 8 * 8)


def _focal_loss_kernel(*refs, gamma, ignore_index, use_alpha, per_tile_sum):
    # Ref layout: logits, targets, [alpha_t], out
    idx = 0
    logits_ref = refs[idx]; idx += 1
    target_ref = refs[idx]; idx += 1
    alpha_ref = None
    if use_alpha:
        alpha_ref = refs[idx]; idx += 1
    out_ref = refs[idx]

    logits = logits_ref[...].astype(jnp.float32)            # (TB, N) f32
    tgt = target_ref[...]                                    # (TB, 1) int32
    TB, N = logits.shape

    # --- numerically stable cross entropy: log-sum-exp + one-hot gather ---
    m = jnp.max(logits, axis=-1, keepdims=True)                           # (TB,1)
    lse = m + jnp.log(jnp.sum(jnp.exp(logits - m), axis=-1, keepdims=True))

    col = jax.lax.broadcasted_iota(jnp.int32, (TB, N), 1)
    onehot = col == tgt
    logit_t = jnp.sum(jnp.where(onehot, logits, 0.0), axis=-1, keepdims=True)

    # Masking: rows with target == ignore_index (including the ragged-tail
    # garbage rows of the last block -- their targets are padded with
    # ignore_index in the wrapper) contribute exactly 0.  jnp.where never
    # propagates NaN/Inf from the unselected branch.
    valid = tgt != ignore_index
    minus_logpt = jnp.where(valid, lse - logit_t, 0.0)                    # (TB,1)
    # Clamp: lse - logit_t can round to a tiny negative -> pt > 1 -> negative
    # base for the power.  Keeps the math robust for any gamma.
    minus_logpt = jnp.maximum(minus_logpt, 0.0)

    # --- focal modulation ---
    pt = jnp.exp(-minus_logpt)
    focal = (1.0 - pt) ** gamma * minus_logpt                             # (TB,1)

    if use_alpha:
        # alpha[target] was gathered in the wrapper -> cheap per-row multiply.
        focal = focal * alpha_ref[...]                                    # (TB,1)

    if per_tile_sum:
        # Per-tile partial sum, broadcast across one lane-dense (1,128) block
        # (unmasked store).  Finished with jnp.sum outside the kernel, so the
        # grid stays fully "parallel".
        part = jnp.sum(focal, keepdims=True)                              # (1,1)
        out_ref[...] = jnp.broadcast_to(part, out_ref.shape)
    else:
        out_ref[...] = focal


def focal_loss(logits, target, *, alpha=None, gamma=8, ignore_index=-100,
               reduction="mean", block_batch=None):
    """Pallas TPU implementation of FocalLoss.forward.

    logits: (B, N) float32 or bfloat16 (kernel upcasts per-tile in VMEM)
    target: (B,)   int
    alpha : optional (N,) float32 class weights
    """
    B, N = logits.shape
    itemsize = jnp.dtype(logits.dtype).itemsize

    tile_budget, vmem_limit = _vmem_budget()
    if block_batch is None:
        tb = _pick_block_batch(B, N, tile_budget)
    else:
        tb = max(8, (int(block_batch) // 8) * 8)
        tb = min(tb, _round_up(B, 8))

    B_pad = _round_up(B, tb)
    n_tiles = B_pad // tb

    target = target.astype(jnp.int32)                                    # (B,)
    use_alpha = alpha is not None
    if use_alpha:
        valid0 = target != ignore_index
        safe_tgt = jnp.where(valid0, target, 0)
        alpha_t = jnp.where(valid0,
                            jnp.asarray(alpha, jnp.float32)[safe_tgt], 0.0)

    # Pad ONLY the tiny per-row arrays (not the logits) -- the padded rows of
    # the last logits block are read out-of-bounds (garbage) and masked by the
    # ignore_index targets in-kernel.
    if B_pad != B:
        target = jnp.pad(target, (0, B_pad - B), constant_values=ignore_index)
        if use_alpha:
            alpha_t = jnp.pad(alpha_t, (0, B_pad - B))
    target_col = target.reshape(B_pad, 1)

    inputs = [logits, target_col]
    in_specs = [
        pl.BlockSpec((tb, N), lambda i: (i, 0)),    # logits tile
        pl.BlockSpec((tb, 1), lambda i: (i, 0)),    # targets tile
    ]
    if use_alpha:
        inputs.append(alpha_t.reshape(B_pad, 1))
        in_specs.append(pl.BlockSpec((tb, 1), lambda i: (i, 0)))

    if reduction == "none":
        out_shape = jax.ShapeDtypeStruct((B_pad, 1), jnp.float32)
        out_spec = pl.BlockSpec((tb, 1), lambda i: (i, 0))
        per_tile_sum = False
        out_bytes = B_pad * 4
    else:
        # Lane-dense per-tile partial sums; grid stays "parallel".
        out_shape = jax.ShapeDtypeStruct((1, 128 * n_tiles), jnp.float32)
        out_spec = pl.BlockSpec((1, 128), lambda i: (0, i))
        per_tile_sum = True
        out_bytes = 128 * n_tiles * 4

    kernel = functools.partial(
        _focal_loss_kernel,
        gamma=gamma,
        ignore_index=ignore_index,
        use_alpha=use_alpha,
        per_tile_sum=per_tile_sum,
    )

    bytes_accessed = (B * N * itemsize + B_pad * 4 + out_bytes
                      + (B_pad * 4 if use_alpha else 0))
    cost = pl.CostEstimate(
        flops=7 * B * N + 16 * B,
        transcendentals=B * N + 2 * B,
        bytes_accessed=int(bytes_accessed),
    )

    out = pl.pallas_call(
        kernel,
        out_shape=out_shape,
        grid=(n_tiles,),
        in_specs=in_specs,
        out_specs=out_spec,
        compiler_params=pltpu.CompilerParams(
            dimension_semantics=("parallel",),
            vmem_limit_bytes=vmem_limit,
        ),
        cost_estimate=cost,
    )(*inputs)

    if reduction == "none":
        return out[:B, 0]

    partials = out.reshape(n_tiles, 128)[:, 0]
    total = jnp.sum(partials)
    if reduction == "mean":
        # torch: CE(reduction='none') then .mean() -> divide by the full B.
        return total * (1.0 / float(B))
    return total


def _reference_focal_loss(logits, target, *, alpha=None, gamma=8,
                          ignore_index=-100, reduction="mean"):
    """Pure-JAX reference matching the PyTorch module."""
    logits = logits.astype(jnp.float32)
    lse = jax.nn.logsumexp(logits, axis=-1)
    valid = target != ignore_index
    safe_tgt = jnp.where(valid, target, 0)
    logit_t = jnp.take_along_axis(logits, safe_tgt[:, None], axis=-1)[:, 0]
    minus_logpt = jnp.where(valid, lse - logit_t, 0.0)
    pt = jnp.exp(-minus_logpt)
    focal = (1.0 - pt) ** gamma * minus_logpt
    if alpha is not None:
        focal = focal * alpha[safe_tgt]
    if reduction == "mean":
        return focal.mean()
    if reduction == "sum":
        return focal.sum()
    return focal


if __name__ == "__main__":
    key = jax.random.PRNGKey(0)
    k1, k2, k3, k4, k5 = jax.random.split(key, 5)

    N = 32

    # Case 1: f32, reduction='mean' (module default), no alpha, single tile,
    # one ignored row.
    B1 = 8
    logits1 = jax.random.normal(k1, (B1, N), dtype=jnp.float32) * 3.0
    target1 = jax.random.randint(k2, (B1,), 0, N, dtype=jnp.int32)
    target1 = target1.at[3].set(-100)
    got1 = jax.block_until_ready(
        focal_loss(logits1, target1, gamma=8, reduction="mean"))
    ref1 = _reference_focal_loss(logits1, target1, gamma=8, reduction="mean")
    assert jnp.allclose(got1, ref1, rtol=2e-5, atol=1e-5), (got1, ref1)

    # Case 2: reduction='sum', multi-tile parallel grid with per-tile partial
    # sums, B not a multiple of the batch tile (unpadded logits -> the last
    # block reads out-of-bounds garbage rows that must be masked).
    B2 = 22
    logits2 = jax.random.normal(k3, (B2, N), dtype=jnp.float32) * 2.0
    target2 = jax.random.randint(k4, (B2,), 0, N, dtype=jnp.int32)
    target2 = target2.at[5].set(-100)
    got2 = jax.block_until_ready(
        focal_loss(logits2, target2, gamma=8, reduction="sum", block_batch=8))
    ref2 = _reference_focal_loss(logits2, target2, gamma=8, reduction="sum")
    assert jnp.allclose(got2, ref2, rtol=2e-5, atol=1e-5), (got2, ref2)

    # Case 3: reduction='none' with alpha weights (wrapper-gathered alpha_t),
    # multi-tile, ragged tail.
    alpha = jax.random.uniform(k5, (N,), dtype=jnp.float32) + 0.5
    got3 = jax.block_until_ready(
        focal_loss(logits2, target2, alpha=alpha, gamma=8, reduction="none",
                   block_batch=8))
    ref3 = _reference_focal_loss(logits2, target2, alpha=alpha, gamma=8,
                                 reduction="none")
    assert got3.shape == (B2,)
    assert jnp.allclose(got3, ref3, rtol=2e-5, atol=1e-5), (got3, ref3)

    # Case 4: caller-provided bf16 logits (no wrapper astype anymore), 'mean'.
    logits2_bf = logits2.astype(jnp.bfloat16)
    got4 = jax.block_until_ready(
        focal_loss(logits2_bf, target2, gamma=8, reduction="mean",
                   block_batch=8))
    ref4 = _reference_focal_loss(logits2_bf.astype(jnp.float32), target2,
                                 gamma=8, reduction="mean")
    assert jnp.allclose(got4, ref4, rtol=1e-4, atol=1e-5), (got4, ref4)

    print("KERNEL_OK")
</pallas_src>

<mosaic_0001>
module attributes {stable_mosaic.version = 11 : i64} {
  func.func @_focal_loss_kernel(%arg0: i32, %arg1: memref<8x32xf32, #tpu.memory_space<vmem>>, %arg2: memref<8x1xi32, #tpu.memory_space<vmem>>, %arg3: memref<1x128xf32, #tpu.memory_space<vmem>>) attributes {dimension_semantics = [#tpu.dimension_semantics<parallel>], iteration_bounds = array<i64: 1>, scalar_prefetch = 0 : i64, scratch_operands = 0 : i64, tpu.core_type = #tpu.core_type<tc>, window_params = [{transform_indices = @transform_0, window_bounds = array<i64: 8, 32>}, {transform_indices = @transform_1, window_bounds = array<i64: 8, 1>}, {transform_indices = @transform_2, window_bounds = array<i64: 1, 128>}]} {
    %c0 = arith.constant 0 : index
    %c0_0 = arith.constant 0 : index
    %0 = vector.load %arg1[%c0, %c0_0] : memref<8x32xf32, #tpu.memory_space<vmem>>, vector<8x32xf32>
    %c0_1 = arith.constant 0 : index
    %c0_2 = arith.constant 0 : index
    %1 = vector.load %arg2[%c0_1, %c0_2] : memref<8x1xi32, #tpu.memory_space<vmem>>, vector<8x1xi32>
    %cst = arith.constant dense<0xFF800000> : vector<8xf32>
    %2 = vector.multi_reduction <maximumf>, %0, %cst [1] : vector<8x32xf32> to vector<8xf32>
    %3 = vector.shape_cast %2 : vector<8xf32> to vector<8x1xf32>
    %4 = vector.broadcast %3 : vector<8x1xf32> to vector<8x32xf32>
    %5 = arith.subf %0, %4 : vector<8x32xf32>
    %6 = math.exp %5 : vector<8x32xf32>
    %cst_3 = arith.constant dense<0.000000e+00> : vector<8xf32>
    %7 = vector.multi_reduction <add>, %6, %cst_3 [1] : vector<8x32xf32> to vector<8xf32>
    %8 = vector.shape_cast %7 : vector<8xf32> to vector<8x1xf32>
    %9 = math.log %8 : vector<8x1xf32>
    %10 = arith.addf %3, %9 : vector<8x1xf32>
    %11 = tpu.iota {dimensions = array<i32: 1>} : vector<8x32xi32>
    %12 = vector.broadcast %1 : vector<8x1xi32> to vector<8x32xi32>
    %13 = arith.cmpi eq, %11, %12 : vector<8x32xi32>
    %cst_4 = arith.constant 0.000000e+00 : f32
    %14 = vector.broadcast %cst_4 : f32 to vector<8x32xf32>
    %15 = arith.select %13, %0, %14 : vector<8x32xi1>, vector<8x32xf32>
    %cst_5 = arith.constant dense<0.000000e+00> : vector<8xf32>
    %16 = vector.multi_reduction <add>, %15, %cst_5 [1] : vector<8x32xf32> to vector<8xf32>
    %17 = vector.shape_cast %16 : vector<8xf32> to vector<8x1xf32>
    %c-100_i32 = arith.constant -100 : i32
    %18 = vector.broadcast %c-100_i32 : i32 to vector<8x1xi32>
    %19 = arith.cmpi ne, %1, %18 : vector<8x1xi32>
    %20 = arith.subf %10, %17 : vector<8x1xf32>
    %cst_6 = arith.constant 0.000000e+00 : f32
    %21 = vector.broadcast %cst_6 : f32 to vector<8x1xf32>
    %22 = arith.select %19, %20, %21 : vector<8x1xi1>, vector<8x1xf32>
    %cst_7 = arith.constant 0.000000e+00 : f32
    %23 = vector.broadcast %cst_7 : f32 to vector<8x1xf32>
    %24 = arith.maximumf %22, %23 : vector<8x1xf32>
    %cst_8 = arith.constant 0.000000e+00 : f32
    %25 = vector.broadcast %cst_8 : f32 to vector<8x1xf32>
    %26 = arith.subf %25, %24 : vector<8x1xf32>
    %27 = math.exp %26 : vector<8x1xf32>
    %cst_9 = arith.constant 1.000000e+00 : f32
    %28 = vector.broadcast %cst_9 : f32 to vector<8x1xf32>
    %29 = arith.subf %28, %27 : vector<8x1xf32>
    %30 = arith.mulf %29, %29 : vector<8x1xf32>
    %31 = arith.mulf %30, %30 : vector<8x1xf32>
    %32 = arith.mulf %31, %31 : vector<8x1xf32>
    %33 = arith.mulf %32, %24 : vector<8x1xf32>
    %34 = vector.shape_cast %33 : vector<8x1xf32> to vector<1x8x1xf32>
    %cst_10 = arith.constant dense<0.000000e+00> : vector<1xf32>
    %35 = vector.multi_reduction <add>, %34, %cst_10 [1, 2] : vector<1x8x1xf32> to vector<1xf32>
    %36 = vector.shape_cast %35 : vector<1xf32> to vector<1x1x1xf32>
    %37 = vector.extract %36[0, 0, 0] : f32 from vector<1x1x1xf32>
    %38 = vector.broadcast %37 : f32 to vector<1x1xf32>
    %39 = vector.shape_cast %38 : vector<1x1xf32> to vector<1x1xf32>
    %40 = vector.broadcast %39 : vector<1x1xf32> to vector<1x128xf32>
    %c0_11 = arith.constant 0 : index
    %c0_12 = arith.constant 0 : index
    %41 = vector.load %arg3[%c0_11, %c0_12] : memref<1x128xf32, #tpu.memory_space<vmem>>, vector<1x128xf32>
    tpu.vector_store %arg3[%c0_11, %c0_12], %40 {strides = array<i32>} : memref<1x128xf32, #tpu.memory_space<vmem>>, vector<1x128xf32>,
    return
  }
  func.func @transform_0(%arg0: i32) -> (i32, i32) {
    %c0_i32 = arith.constant 0 : i32
    %c0_i32_0 = arith.constant 0 : i32
    return %arg0, %c0_i32 : i32, i32
  }
  func.func @transform_1(%arg0: i32) -> (i32, i32) {
    %c0_i32 = arith.constant 0 : i32
    %c0_i32_0 = arith.constant 0 : i32
    return %arg0, %c0_i32 : i32, i32
  }
  func.func @transform_2(%arg0: i32) -> (i32, i32) {
    %c0_i32 = arith.constant 0 : i32
    %c0_i32_0 = arith.constant 0 : i32
    return %c0_i32, %arg0 : i32, i32
  }
}

</mosaic_0001>

<llo_original>
// kernel: tpu_custom_call.1
$region0: #{tpu_custom_call.1}
  #allocation0 [shape = 'u32[]', space=smem, size = 0x4, offset = 0x4, fixed_abs, tag = 'smem constant byte address 0x4 - core index']
  #allocation1 [shape = 'u32[144,128]{1,0:T(1,128)}', space=vmem, size = 0x12000, scoped, tag = 'internal scratch']
  %s0 = inlined_call_operand.vmem [shape: f32[8,32], index: 0, kind: input, shape index: {}]
  %s1 = inlined_call_operand.vmem [shape: s32[8,1], index: 1, kind: input, shape index: {}]
  %s2 = inlined_call_operand.hbm [shape: f32[1,128], index: 2, kind: output, shape index: {}]
  %s3 = sld [smem:[#allocation0]]
  $region18: #{tpu_custom_call.1} parent=0
    _
  %s5 = ssub.s32 1, %s3
  %s6 = scalar_select 0, %s5, %s3
  $region1: #{tpu_custom_call.1} parent=0
    #allocation2 [shape = 'u8[512]{0}', space=vmem, size = 0x400, scoped, tag = 'output window, operand 0, single buffered']
    #allocation3 [shape = 's32[1]{0}', space=sflag, size = 0x4, scoped, tag = 'scoped memory for tpu_custom_call.1']
    %7 = vsyncpa [#allocation3], 0
    // Predicated region
    $region2: #{tpu_custom_call.1} parent=1 // pred_check
      _
    $region3: #{tpu_custom_call.1} parent=1 // pred_check_branch
      %9 = sbr.rel (0) target = $region5
    $region4: #{tpu_custom_call.1} parent=1 // pred_region
      _
    $region5: #{tpu_custom_call.1} parent=1 // pred_fallthru
      _
    // Predicated region
    $region6: #{tpu_custom_call.1} parent=1 // pred_check
      _
    $region7: #{tpu_custom_call.1} parent=1 // pred_check_branch
      %11 = sbr.rel (0) target = $region9
    $region8: #{tpu_custom_call.1} parent=1 // pred_region
      _
    $region9: #{tpu_custom_call.1} parent=1 // pred_fallthru
      _
    %v12 = vld [vmem:[%s0] sm:$0xff]
    %v13 = vld [vmem:[%s1] sm:$0xff]
    %vm14 = vcmask 261120
    %v15 = vsel %vm14, %v12, -inf
    %16 = vmax.xlane.f32.xlu0 %v15
    %v17 = vpop.xlane.xlu0 %16
    %v18 = vsub.f32 %v12, %v17
    %v19 = vmul.f32 %v18, 1.442695
    %v20 = vpow.pop %v19
    %v21 = vsel %vm14, %v20, 0.0
    %22 = vadd.xlane.f32.xlu0 %v21
    %v23 = vpop.xlane.xlu0 %22
    %v24 = vlog2.pop %v23
    %v25 = vmul.f32 %v24, 0.6931472
    %v26 = vadd.f32 %v17, %v25
    %v27 = vlaneseq
    %v28 = vand.u32 %v27, 127
    %29 = vset.pattern.permute.xlu0 0
    %30 = vperm.xlu0 %29, %v13
    %v31 = vpop.permute.xlu0 %30
    %vm32 = vcmp.eq.s32.totalorder %v28, %v31
    %v33 = vsel %vm32, %v12, 0.0
    %v34 = vsel %vm14, %v33, 0.0
    %35 = vadd.xlane.f32.xlu0 %v34
    %v36 = vpop.xlane.xlu0 %35
    %vm37 = vcmp.ne.s32.totalorder %v13, 4294967196
    %v38 = vsub.f32 %v26, %v36
    %v39 = vsel %vm37, %v38, 0.0
    %v40 = vmax.f32 %v39, 0.0
    %v41 = vsub.f32 0.0, %v40
    %v42 = vmul.f32 %v41, 1.442695
    %v43 = vpow.pop %v42
    %v44 = vsub.f32 1.0, %v43
    %v45 = vmul.f32 %v44, %v44
    %v46 = vmul.f32 %v45, %v45
    %v47 = vmul.f32 %v46, %v46
    %v48 = vmul.f32 %v47, %v40
    %vm49 = vcmask 7168
    %v50 = vsel %vm49, %v48, 0.0
    %51 = vadd.xlane.f32.xlu0 %v50
    %v52 = vpop.xlane.xlu0 %51
    %v53 = vrot.slane %v52, 4
    %v54 = vadd.f32 %v52, %v53
    %v55 = vrot.slane %v54, 2
    %v56 = vadd.f32 %v54, %v55
    %v57 = vrot.slane %v56, 1
    %v58 = vadd.f32 %v56, %v57
    %s59 = vtos %v58
    %v60 = vstv %s59
    %61 = vst [vmem:[#allocation2] sm:$0x1] %v60
    // Predicated region
    $region10: #{tpu_custom_call.1} parent=1 // pred_check
      _
    $region11: #{tpu_custom_call.1} parent=1 // pred_check_branch
      %63 = sbr.rel (0) target = $region13
    $region12: #{tpu_custom_call.1} parent=1 // pred_region
      %s65 = ssub.s32 16, 16
      %66 = vsyncadd [#allocation3], %s65
      %s68 = sshll.u32 [#allocation2], 4
      %s69 = int_to_ptr.vmem [resolvable:$true] %s68
      %71 = dma.vmem_to_hbm [thread:$0]  %s69, 16, %s2, [#allocation3]
    $region13: #{tpu_custom_call.1} parent=1 // pred_fallthru
      _
    // Predicated region
    $region14: #{tpu_custom_call.1} parent=1 // pred_check
      _
    $region15: #{tpu_custom_call.1} parent=1 // pred_check_branch
      %73 = sbr.rel (0) target = $region17
    $region16: #{tpu_custom_call.1} parent=1 // pred_region
      %74 = dma.done [#allocation3], 16
    $region17: #{tpu_custom_call.1} parent=1 // pred_fallthru
      _
    %75 = vsyncpa [#allocation3], 1

</llo_original>
